<compile_context>
chip_gen: v6e
topology: v6e:2x2x1
jax: 0.10.0
libtpu: 0.0.40
codegen_flags: <defaults>
</compile_context>

<pallas_src>
import jax
import jax.numpy as jnp
from jax import lax
from jax.experimental import pallas as pl
from jax.experimental.pallas import tpu as pltpu


_TARGET_BLOCK_BYTES = 3 * 1024 * 1024     # padded (in + halo + out) bytes per grid step
_VMEM_LIMIT_BYTES = 40 * 1024 * 1024      # fits v5e/v6e/v7x scoped-VMEM budgets
_MIN_GRID_STEPS = 8                        # pipelining + both v7x TensorCores


def _round_up(v, m):
    return (v + m - 1) // m * m


def _conv3x3s2_kernel(p_ref, halo_ref, w_ref, b_ref, o_ref):
    """One (batch-tile, output-row-tile) block of the 3x3/stride-2 reflect conv.

    p_ref:    (TB, TQ,   S_pad, 4*C_in)  VMEM  main phase rows of this block
    halo_ref: (TB, 1,    S_pad, 4*C_in)  VMEM  +1 halo phase row
    w_ref:    (9*C_in, C_out)            VMEM  weight, rows ordered (dy, dx, c)
    b_ref:    (1, C_out)                 VMEM  bias
    o_ref:    (TB, TQ, Wo_pad, C_out)    VMEM  output rows of this block
    """
    tb, tq, _, c4 = p_ref.shape
    c_in = c4 // 4
    wo_pad, c_out = o_ref.shape[2], o_ref.shape[3]

    # TQ main rows + 1 halo row (adjacent row blocks share one phase row).
    pall = jnp.concatenate([p_ref[...], halo_ref[...]], axis=1)  # (tb, tq+1, S, 4C)

    # im2col, built ONCE per block: every tap is a static sublane/lane slice.
    slabs = []
    for dy in range(3):
        for dx in range(3):
            ph = 2 * (dy % 2) + (dx % 2)
            q0, s0 = dy // 2, dx // 2
            slabs.append(pall[:, q0:q0 + tq, s0:s0 + wo_pad,
                              ph * c_in:(ph + 1) * c_in])
    cols = jnp.concatenate(slabs, axis=-1)          # (tb, tq, wo_pad, 9*c_in)
    # Layout-preserving flatten (wo_pad is a multiple of 8 by construction).
    cols = cols.reshape(tb * tq * wo_pad, 9 * c_in)

    # Channel contraction on the MXU, f32 accumulation, bias via broadcast add.
    acc = jnp.dot(cols, w_ref[...], preferred_element_type=jnp.float32)
    acc = acc + b_ref[...]
    o_ref[...] = acc.reshape(tb, tq, wo_pad, c_out).astype(o_ref.dtype)


def _pick_tiles(n, ho, row_in_b, row_out_b, target_bytes, min_steps=_MIN_GRID_STEPS):
    """Choose (tb, tq): images per grid step and output rows per grid step."""
    per_row = row_in_b + row_out_b
    per_img = (ho + 1) * row_in_b + ho * row_out_b
    if per_img <= target_bytes:
        tb = max(1, min(n, target_bytes // per_img))
        tq = ho
    else:
        tb = 1
        tq = max(1, min(ho, (target_bytes - row_in_b) // per_row))

    def _steps(tb_, tq_):
        return pl.cdiv(n, tb_) * pl.cdiv(ho, tq_)

    # Prefer more grid steps: shrink the batch tile first, then the row tile.
    while tb > 1 and _steps(tb, tq) < min_steps:
        tb = max(1, tb // 2)
    while tq > 1 and _steps(tb, tq) < min_steps:
        tq = max(1, (tq + 1) // 2)
    return tb, tq


def _ds_conv_forward(x, weight, bias):
    """Pallas equivalent of ds_conv.forward(x) for NCHW input.

    x:      (N, C_in, H, W)
    weight: (C_out, C_in, 3, 3)   (PyTorch Conv2d layout)
    bias:   (C_out,)
    returns (N, C_out, ceil(H/2), ceil(W/2)) float32
    """
    x = x.astype(jnp.float32)
    n, c_in, h, w = x.shape
    c_out = weight.shape[0]
    assert weight.shape == (c_out, c_in, 3, 3)
    assert h >= 2 and w >= 2, "reflect padding of 1 needs spatial dims >= 2"

    ho, wo = (h + 1) // 2, (w + 1) // 2
    wo_pad = _round_up(wo, 8)          # lane/sublane-friendly width; sliced off below
    c4 = 4 * c_in

    # Padded (VMEM) bytes per phase row / output row of one image.
    row_in_b = _round_up(wo_pad + 1, 8) * _round_up(c4, 128) * 4
    row_out_b = wo_pad * _round_up(c_out, 128) * 4
    tb, tq = _pick_tiles(n, ho, row_in_b, row_out_b, _TARGET_BLOCK_BYTES)
    nb, nr = pl.cdiv(n, tb), pl.cdiv(ho, tq)
    n_pad, ho_pad = nb * tb, nr * tq            # pad instead of degrading to tb=1
    q_pad, s_pad = ho_pad + 1, wo_pad + 1

    # --- one XLA layout pass over the input -----------------------------------
    # reflect-pad + stride-2 space-to-depth, channels last:
    #   phases[b, q, s, (2*rp+cp)*C_in + c] == x_reflectpad[b, c, 2q+rp, 2s+cp]
    # (extra zero rows/cols/batches are DMA'd but their outputs are sliced off).
    xp = jnp.pad(x, ((0, 0), (0, 0), (1, 1), (1, 1)), mode="reflect")
    xp = jnp.pad(xp, ((0, n_pad - n), (0, 0),
                      (0, 2 * q_pad - (h + 2)), (0, 2 * s_pad - (w + 2))))
    phases = (xp.reshape(n_pad, c_in, q_pad, 2, s_pad, 2)
                .transpose(0, 2, 4, 3, 5, 1)
                .reshape(n_pad, q_pad, s_pad, c4))

    # Weight as the (9*C_in, C_out) matmul operand, rows ordered (dy, dx, c).
    w2 = weight.astype(jnp.float32).transpose(2, 3, 1, 0).reshape(9 * c_in, c_out)
    b2 = bias.astype(jnp.float32).reshape(1, c_out)

    out = pl.pallas_call(
        _conv3x3s2_kernel,
        out_shape=jax.ShapeDtypeStruct((n_pad, ho_pad, wo_pad, c_out), jnp.float32),
        grid_spec=pltpu.PrefetchScalarGridSpec(
            num_scalar_prefetch=0,
            grid=(nb, nr),
            in_specs=[
                # main phase rows [r*tq, r*tq + tq)
                pl.BlockSpec((tb, tq, s_pad, c4), lambda b, r: (b, r, 0, 0)),
                # +1 halo phase row r*tq + tq (second view of the same array)
                pl.BlockSpec((tb, 1, s_pad, c4), lambda b, r: (b, r * tq + tq, 0, 0)),
                # weights / bias: resident, constant block index
                pl.BlockSpec((9 * c_in, c_out), lambda b, r: (0, 0)),
                pl.BlockSpec((1, c_out), lambda b, r: (0, 0)),
            ],
            out_specs=pl.BlockSpec((tb, tq, wo_pad, c_out), lambda b, r: (b, r, 0, 0)),
        ),
        compiler_params=pltpu.CompilerParams(
            dimension_semantics=("parallel", "parallel"),
            vmem_limit_bytes=_VMEM_LIMIT_BYTES),
    )(phases, phases, w2, b2)

    # (N, Ho, Wo, C_out) -> NCHW to match the PyTorch module (one small output pass).
    return out[:n, :ho, :wo, :].transpose(0, 3, 1, 2)


ds_conv_forward = jax.jit(_ds_conv_forward)


def _reference_ds_conv(x, weight, bias):
    """Reference: reflect-pad 1, then 3x3 stride-2 VALID conv + bias."""
    xp = jnp.pad(x, ((0, 0), (0, 0), (1, 1), (1, 1)), mode="reflect")
    y = lax.conv_general_dilated(
        xp, weight, window_strides=(2, 2), padding="VALID",
        dimension_numbers=("NCHW", "OIHW", "NCHW"),
        precision=lax.Precision.HIGHEST)
    return y + bias.reshape(1, -1, 1, 1)


if __name__ == "__main__":
    key = jax.random.PRNGKey(0)
    kx, kw, kb = jax.random.split(key, 3)
    N, C_IN, C_OUT, H, W = 2, 4, 8, 16, 16

    x = jax.random.normal(kx, (N, C_IN, H, W), dtype=jnp.float32)
    weight = jax.random.normal(kw, (C_OUT, C_IN, 3, 3), dtype=jnp.float32) * 0.1
    bias = jax.random.normal(kb, (C_OUT,), dtype=jnp.float32) * 0.1

    y = ds_conv_forward(x, weight, bias)
    y = jax.block_until_ready(y)

    y_ref = _reference_ds_conv(x, weight, bias)
    assert y.shape == (N, C_OUT, H // 2, W // 2), y.shape
    # f32 MXU contraction agrees to ~1e-6; tolerance leaves headroom for any
    # generation-dependent matmul pass count.
    err = float(jnp.max(jnp.abs(y - y_ref)))
    assert jnp.allclose(y, y_ref, atol=2e-3, rtol=2e-3), err
    print("KERNEL_OK")
</pallas_src>

<mosaic_0001>
module attributes {stable_mosaic.version = 11 : i64} {
  func.func @_conv3x3s2_kernel(%arg0: i32, %arg1: i32, %arg2: memref<1x2x9x16xf32, #tpu.memory_space<vmem>>, %arg3: memref<1x1x9x16xf32, #tpu.memory_space<vmem>>, %arg4: memref<36x8xf32, #tpu.memory_space<vmem>>, %arg5: memref<1x8xf32, #tpu.memory_space<vmem>>, %arg6: memref<1x2x8x8xf32, #tpu.memory_space<vmem>>) attributes {dimension_semantics = [#tpu.dimension_semantics<parallel>, #tpu.dimension_semantics<parallel>], iteration_bounds = array<i64: 2, 4>, scalar_prefetch = 0 : i64, scratch_operands = 0 : i64, tpu.core_type = #tpu.core_type<tc>, window_params = [{transform_indices = @transform_0, window_bounds = array<i64: 1, 2, 9, 16>}, {transform_indices = @transform_1, window_bounds = array<i64: 1, 1, 9, 16>}, {pipeline_mode = #tpu.pipeline_mode<synchronous>, transform_indices = @transform_2, window_bounds = array<i64: 36, 8>}, {pipeline_mode = #tpu.pipeline_mode<synchronous>, transform_indices = @transform_3, window_bounds = array<i64: 1, 8>}, {transform_indices = @transform_4, window_bounds = array<i64: 1, 2, 8, 8>}]} {
    %c0 = arith.constant 0 : index
    %c0_0 = arith.constant 0 : index
    %c0_1 = arith.constant 0 : index
    %c0_2 = arith.constant 0 : index
    %0 = vector.load %arg2[%c0, %c0_0, %c0_1, %c0_2] : memref<1x2x9x16xf32, #tpu.memory_space<vmem>>, vector<1x2x9x16xf32>
    %c0_3 = arith.constant 0 : index
    %c0_4 = arith.constant 0 : index
    %c0_5 = arith.constant 0 : index
    %c0_6 = arith.constant 0 : index
    %1 = vector.load %arg3[%c0_3, %c0_4, %c0_5, %c0_6] : memref<1x1x9x16xf32, #tpu.memory_space<vmem>>, vector<1x1x9x16xf32>
    %2 = tpu.concatenate %0, %1 in 1 : vector<1x2x9x16xf32>, vector<1x1x9x16xf32> -> vector<1x3x9x16xf32>
    %3 = vector.extract_strided_slice %2 {offsets = [0, 0, 0, 0], sizes = [1, 2, 8, 4], strides = [1, 1, 1, 1]} : vector<1x3x9x16xf32> to vector<1x2x8x4xf32>
    %4 = vector.extract_strided_slice %2 {offsets = [0, 0, 0, 4], sizes = [1, 2, 8, 4], strides = [1, 1, 1, 1]} : vector<1x3x9x16xf32> to vector<1x2x8x4xf32>
    %5 = vector.extract_strided_slice %2 {offsets = [0, 0, 1, 0], sizes = [1, 2, 8, 4], strides = [1, 1, 1, 1]} : vector<1x3x9x16xf32> to vector<1x2x8x4xf32>
    %6 = vector.extract_strided_slice %2 {offsets = [0, 0, 0, 8], sizes = [1, 2, 8, 4], strides = [1, 1, 1, 1]} : vector<1x3x9x16xf32> to vector<1x2x8x4xf32>
    %7 = vector.extract_strided_slice %2 {offsets = [0, 0, 0, 12], sizes = [1, 2, 8, 4], strides = [1, 1, 1, 1]} : vector<1x3x9x16xf32> to vector<1x2x8x4xf32>
    %8 = vector.extract_strided_slice %2 {offsets = [0, 0, 1, 8], sizes = [1, 2, 8, 4], strides = [1, 1, 1, 1]} : vector<1x3x9x16xf32> to vector<1x2x8x4xf32>
    %9 = vector.extract_strided_slice %2 {offsets = [0, 1, 0, 0], sizes = [1, 2, 8, 4], strides = [1, 1, 1, 1]} : vector<1x3x9x16xf32> to vector<1x2x8x4xf32>
    %10 = vector.extract_strided_slice %2 {offsets = [0, 1, 0, 4], sizes = [1, 2, 8, 4], strides = [1, 1, 1, 1]} : vector<1x3x9x16xf32> to vector<1x2x8x4xf32>
    %11 = vector.extract_strided_slice %2 {offsets = [0, 1, 1, 0], sizes = [1, 2, 8, 4], strides = [1, 1, 1, 1]} : vector<1x3x9x16xf32> to vector<1x2x8x4xf32>
    %12 = tpu.concatenate %3, %4, %5, %6, %7, %8, %9, %10, %11 in 3 : vector<1x2x8x4xf32>, vector<1x2x8x4xf32>, vector<1x2x8x4xf32>, vector<1x2x8x4xf32>, vector<1x2x8x4xf32>, vector<1x2x8x4xf32>, vector<1x2x8x4xf32>, vector<1x2x8x4xf32>, vector<1x2x8x4xf32> -> vector<1x2x8x36xf32>
    %13 = vector.shape_cast %12 : vector<1x2x8x36xf32> to vector<16x36xf32>
    %c0_7 = arith.constant 0 : index
    %c0_8 = arith.constant 0 : index
    %14 = vector.load %arg4[%c0_7, %c0_8] : memref<36x8xf32, #tpu.memory_space<vmem>>, vector<36x8xf32>
    %cst = arith.constant dense<0.000000e+00> : vector<16x8xf32>
    %15 = tpu.matmul %13, %14, %cst {dimension_numbers = #tpu.dot_dimension_numbers<[1], [0], [0], [1], [0, 0, 1, 1], [], []>} : vector<16x36xf32>, vector<36x8xf32>, vector<16x8xf32> -> vector<16x8xf32>
    %c0_9 = arith.constant 0 : index
    %c0_10 = arith.constant 0 : index
    %16 = vector.load %arg5[%c0_9, %c0_10] : memref<1x8xf32, #tpu.memory_space<vmem>>, vector<1x8xf32>
    %17 = vector.broadcast %16 : vector<1x8xf32> to vector<16x8xf32>
    %18 = arith.addf %15, %17 : vector<16x8xf32>
    %19 = vector.shape_cast %18 : vector<16x8xf32> to vector<1x2x8x8xf32>
    %c0_11 = arith.constant 0 : index
    %c0_12 = arith.constant 0 : index
    %c0_13 = arith.constant 0 : index
    %c0_14 = arith.constant 0 : index
    %20 = vector.load %arg6[%c0_11, %c0_12, %c0_13, %c0_14] : memref<1x2x8x8xf32, #tpu.memory_space<vmem>>, vector<1x2x8x8xf32>
    tpu.vector_store %arg6[%c0_11, %c0_12, %c0_13, %c0_14], %19 {strides = array<i32>} : memref<1x2x8x8xf32, #tpu.memory_space<vmem>>, vector<1x2x8x8xf32>,
    return
  }
  func.func @transform_0(%arg0: i32, %arg1: i32) -> (i32, i32, i32, i32) {
    %c0_i32 = arith.constant 0 : i32
    %c0_i32_0 = arith.constant 0 : i32
    %c0_i32_1 = arith.constant 0 : i32
    return %arg0, %arg1, %c0_i32, %c0_i32_0 : i32, i32, i32, i32
  }
  func.func @transform_1(%arg0: i32, %arg1: i32) -> (i32, i32, i32, i32) {
    %c2_i32 = arith.constant 2 : i32
    %0 = arith.muli %arg1, %c2_i32 : i32
    %c2_i32_0 = arith.constant 2 : i32
    %1 = arith.addi %0, %c2_i32_0 : i32
    %c0_i32 = arith.constant 0 : i32
    %c0_i32_1 = arith.constant 0 : i32
    %c0_i32_2 = arith.constant 0 : i32
    return %arg0, %1, %c0_i32, %c0_i32_1 : i32, i32, i32, i32
  }
  func.func @transform_2(%arg0: i32, %arg1: i32) -> (i32, i32) {
    %c0_i32 = arith.constant 0 : i32
    %c0_i32_0 = arith.constant 0 : i32
    %c0_i32_1 = arith.constant 0 : i32
    return %c0_i32, %c0_i32_0 : i32, i32
  }
  func.func @transform_3(%arg0: i32, %arg1: i32) -> (i32, i32) {
    %c0_i32 = arith.constant 0 : i32
    %c0_i32_0 = arith.constant 0 : i32
    %c0_i32_1 = arith.constant 0 : i32
    return %c0_i32, %c0_i32_0 : i32, i32
  }
  func.func @transform_4(%arg0: i32, %arg1: i32) -> (i32, i32, i32, i32) {
    %c0_i32 = arith.constant 0 : i32
    %c0_i32_0 = arith.constant 0 : i32
    %c0_i32_1 = arith.constant 0 : i32
    return %arg0, %arg1, %c0_i32, %c0_i32_0 : i32, i32, i32, i32
  }
}

</mosaic_0001>

<llo_original>
// kernel: _ds_conv_forward.1
$region0: #{_ds_conv_forward.1}
  #allocation0 [shape = 'u32[]', space=smem, size = 0x4, offset = 0x4, fixed_abs, tag = 'smem constant byte address 0x4 - core index']
  #allocation1 [shape = 'u32[144,128]{1,0:T(1,128)}', space=vmem, size = 0x12000, scoped, tag = 'internal scratch']
  %s0 = inlined_call_operand.vmem [shape: f32[2,9,9,16], index: 0, kind: input, shape index: {}, may-alias: {0,1}]
  %s1 = inlined_call_operand.vmem [shape: f32[2,9,9,16], index: 1, kind: input, shape index: {}, may-alias: {0,1}]
  %s2 = inlined_call_operand.vmem [shape: f32[36,8], index: 2, kind: input, shape index: {}]
  %s3 = inlined_call_operand.vmem [shape: f32[1,8], index: 3, kind: input, shape index: {}]
  %s4 = inlined_call_operand.vmem [shape: f32[2,8,8,8], index: 4, kind: output, shape index: {}]
  %s5 = sld [smem:[#allocation0]]
  $region49: #{_ds_conv_forward.1} parent=0
    _
  %s7 = ssub.s32 1, %s5
  %s8 = scalar_select 0, %s7, %s5
  loop: start=0, step=1, limit=10
  $region2: #{_ds_conv_forward.1} parent=0 // loop_pre_header
    _
  $region3: #{_ds_conv_forward.1} parent=0 // loop_header
    %s10 = sphi 0, %s14
    %p11 = scmp.ge.s32.totalorder %s10, 10
    %s17 = sphi 0, %s29
    %s18 = sphi 0, %s25
    %s19 = sphi 0, %s17
    %s20 = sphi 0, %s18
    %s21 = sphi 0, %s19
    %s22 = sphi 0, %s20
    %s34 = sphi 0, %s36
    %s37 = sphi 0, %s34
    %s38 = sphi 0, %s37
    %s54 = sphi 0, %s38
    %s66 = sphi 0, %s68
    %s69 = sphi 0, %s66
    %s70 = sphi 0, %s69
    %s86 = sphi 0, %s70
    %s90 = sphi 0, %s90
    %s92 = sphi 0, %s90
    %s93 = sphi 0, %s92
    %s107 = sphi 0, %s93
    %s111 = sphi 0, %s111
    %s113 = sphi 0, %s111
    %s114 = sphi 0, %s113
    %s128 = sphi 0, %s114
    %s136 = sphi 0, %s138
    %s139 = sphi 0, %s136
    %s140 = sphi 0, %s139
    %s156 = sphi 0, %s140
  $region4: #{_ds_conv_forward.1} parent=0 // loop_header_branch
    %13 = sbr.rel (%p11) target = $region8
  $region5: #{_ds_conv_forward.1} parent=0 // loop_body
    %s15 = ssub.s32 %s10, 1
    %s16 = ssub.s32 %s10, 2
    %s23 = sadd.s32 1, %s18
    %p24 = scmp.ge.s32.totalorder %s23, 4
    %s25 = scalar_select %p24, 0, %s23
    %s26 = sadd.s32 1, %s17
    %s27 = scalar_select %p24, %s26, %s17
    %p28 = scmp.ge.s32.totalorder %s27, 2
    %s29 = scalar_select %p28, 0, %s27
    %s30 = ssub.s32 %s17, %s29
    %s31 = ssub.s32 %s18, %s25
    %s32 = sor.u32 %s30, %s31
    %p33 = scmp.eq.s32.totalorder %s32, 0
    %s35 = sadd.s32 %s34, 1
    %s36 = scalar_select %p33, %s34, %s35
    %p39 = pneg %p33
    %p40 = scmp.eq.s32.totalorder %s10, 7
    %p41 = por %p39, %p40
    %p42 = scmp.ne.s32.totalorder %s34, %s37
    %p43 = scmp.eq.s32.totalorder %s10, 0
    %p44 = por %p42, %p43
    %p45 = scmp.ne.s32.totalorder %s34, %s37
    %p46 = scmp.eq.s32.totalorder %s15, 7
    %p47 = por %p45, %p46
    %p48 = scmp.ne.s32.totalorder %s37, %s38
    %p49 = scmp.eq.s32.totalorder %s15, 0
    %p50 = por %p48, %p49
    %p51 = scmp.ne.s32.totalorder %s37, %s38
    %p52 = scmp.eq.s32.totalorder %s16, 7
    %p53 = por %p51, %p52
    %p55 = scmp.ne.s32.totalorder %s38, %s54
    %p56 = scmp.eq.s32.totalorder %s16, 0
    %p57 = por %p55, %p56
    %s58 = smul.u32 %s18, 2
    %s59 = sadd.s32 %s58, 2
    %s60 = smul.u32 %s25, 2
    %s61 = sadd.s32 %s60, 2
    %s62 = ssub.s32 %s17, %s29
    %s63 = ssub.s32 %s59, %s61
    %s64 = sor.u32 %s62, %s63
    %p65 = scmp.eq.s32.totalorder %s64, 0
    %s67 = sadd.s32 %s66, 1
    %s68 = scalar_select %p65, %s66, %s67
    %p71 = pneg %p65
    %p72 = scmp.eq.s32.totalorder %s10, 7
    %p73 = por %p71, %p72
    %p74 = scmp.ne.s32.totalorder %s66, %s69
    %p75 = scmp.eq.s32.totalorder %s10, 0
    %p76 = por %p74, %p75
    %p77 = scmp.ne.s32.totalorder %s66, %s69
    %p78 = scmp.eq.s32.totalorder %s15, 7
    %p79 = por %p77, %p78
    %p80 = scmp.ne.s32.totalorder %s69, %s70
    %p81 = scmp.eq.s32.totalorder %s15, 0
    %p82 = por %p80, %p81
    %p83 = scmp.ne.s32.totalorder %s69, %s70
    %p84 = scmp.eq.s32.totalorder %s16, 7
    %p85 = por %p83, %p84
    %p87 = scmp.ne.s32.totalorder %s70, %s86
    %p88 = scmp.eq.s32.totalorder %s16, 0
    %p89 = por %p87, %p88
    %s91 = sadd.s32 %s90, 1
    %p94 = scmp.eq.s32.totalorder %s10, 7
    %p95 = scmp.ne.s32.totalorder %s90, %s92
    %p96 = scmp.eq.s32.totalorder %s10, 0
    %p97 = por %p95, %p96
    %p98 = scmp.ne.s32.totalorder %s90, %s92
    %p99 = scmp.eq.s32.totalorder %s15, 7
    %p100 = por %p98, %p99
    %p101 = scmp.ne.s32.totalorder %s92, %s93
    %p102 = scmp.eq.s32.totalorder %s15, 0
    %p103 = por %p101, %p102
    %p104 = scmp.ne.s32.totalorder %s92, %s93
    %p105 = scmp.eq.s32.totalorder %s16, 7
    %p106 = por %p104, %p105
    %p108 = scmp.ne.s32.totalorder %s93, %s107
    %p109 = scmp.eq.s32.totalorder %s16, 0
    %p110 = por %p108, %p109
    %s112 = sadd.s32 %s111, 1
    %p115 = scmp.eq.s32.totalorder %s10, 7
    %p116 = scmp.ne.s32.totalorder %s111, %s113
    %p117 = scmp.eq.s32.totalorder %s10, 0
    %p118 = por %p116, %p117
    %p119 = scmp.ne.s32.totalorder %s111, %s113
    %p120 = scmp.eq.s32.totalorder %s15, 7
    %p121 = por %p119, %p120
    %p122 = scmp.ne.s32.totalorder %s113, %s114
    %p123 = scmp.eq.s32.totalorder %s15, 0
    %p124 = por %p122, %p123
    %p125 = scmp.ne.s32.totalorder %s113, %s114
    %p126 = scmp.eq.s32.totalorder %s16, 7
    %p127 = por %p125, %p126
    %p129 = scmp.ne.s32.totalorder %s114, %s128
    %p130 = scmp.eq.s32.totalorder %s16, 0
    %p131 = por %p129, %p130
    %s132 = ssub.s32 %s17, %s29
    %s133 = ssub.s32 %s18, %s25
    %s134 = sor.u32 %s132, %s133
    %p135 = scmp.eq.s32.totalorder %s134, 0
    %s137 = sadd.s32 %s136, 1
    %s138 = scalar_select %p135, %s136, %s137
    %p141 = pneg %p135
    %p142 = scmp.eq.s32.totalorder %s10, 7
    %p143 = por %p141, %p142
    %p144 = scmp.ne.s32.totalorder %s136, %s139
    %p145 = scmp.eq.s32.totalorder %s10, 0
    %p146 = por %p144, %p145
    %p147 = scmp.ne.s32.totalorder %s136, %s139
    %p148 = scmp.eq.s32.totalorder %s15, 7
    %p149 = por %p147, %p148
    %p150 = scmp.ne.s32.totalorder %s139, %s140
    %p151 = scmp.eq.s32.totalorder %s15, 0
    %p152 = por %p150, %p151
    %p153 = scmp.ne.s32.totalorder %s139, %s140
    %p154 = scmp.eq.s32.totalorder %s16, 7
    %p155 = por %p153, %p154
    %p157 = scmp.ne.s32.totalorder %s140, %s156
    %p158 = scmp.eq.s32.totalorder %s16, 0
    %p159 = por %p157, %p158
    %p160 = scmp.le.s32.totalorder 1, %s10
    %p161 = scmp.lt.s32.totalorder %s10, 9
    %p162 = pnand %p160, %p161
    %p163 = pneg %p162
    // Predicated region
    $region9: #{_ds_conv_forward.1} parent=5 // pred_check
      _
    $region10: #{_ds_conv_forward.1} parent=5 // pred_check_branch
      %165 = sbr.rel (%p162) target = $region12
    $region11: #{_ds_conv_forward.1} parent=5 // pred_region
      %s166 = ssub.s32 %s10, 1
      // Predicated region
      $region13: #{_ds_conv_forward.1} parent=11 // pred_check
        %p167 = pneg %p103
      $region14: #{_ds_conv_forward.1} parent=11 // pred_check_branch
        %169 = sbr.rel (%p167) target = $region16
      $region15: #{_ds_conv_forward.1} parent=11 // pred_region
        _
      $region16: #{_ds_conv_forward.1} parent=11 // pred_fallthru
        _
      // Predicated region
      $region17: #{_ds_conv_forward.1} parent=11 // pred_check
        %p170 = pneg %p124
      $region18: #{_ds_conv_forward.1} parent=11 // pred_check_branch
        %172 = sbr.rel (%p170) target = $region20
      $region19: #{_ds_conv_forward.1} parent=11 // pred_region
        _
      $region20: #{_ds_conv_forward.1} parent=11 // pred_fallthru
        _
    $region12: #{_ds_conv_forward.1} parent=5 // pred_fallthru
      _
    %p173 = scmp.lt.s32.totalorder %s10, 8
    // Predicated region
    $region21: #{_ds_conv_forward.1} parent=5 // pred_check
      %p174 = pneg %p173
    $region22: #{_ds_conv_forward.1} parent=5 // pred_check_branch
      %176 = sbr.rel (%p174) target = $region24
    $region23: #{_ds_conv_forward.1} parent=5 // pred_region
      // Predicated region
      $region25: #{_ds_conv_forward.1} parent=23 // pred_check
        %p177 = pneg %p44
      $region26: #{_ds_conv_forward.1} parent=23 // pred_check_branch
        %179 = sbr.rel (%p177) target = $region28
      $region27: #{_ds_conv_forward.1} parent=23 // pred_region
        %s180 = smul.u32 2, %s18
        %s181 = ssub.s32 9, %s180
        %p182 = scmp.lt.s32.totalorder %s181, 2
        %s183 = scalar_select %p182, %s181, 2
        %s184 = smul.u32 128, %s183
        %s185 = smul.u32 %s184, 2
        %p186 = scmp.lt.s32.totalorder %s17, 1
        %s187 = scalar_select %p186, %s17, 1
        %p188 = scmp.lt.s32.totalorder %s180, 8
        %s189 = scalar_select %p188, %s180, 8
        %s190 = smul.addr %s189, 2
        %s191 = smul.addr %s187, 18
        %s192 = sadd.s32 %s190, %s191
        %s193 = smul.addr %s192, 8
        %s194 = scalar_lea.vmem %s0, %s193
        %s195 = smul.u32 2, %s18
        %s196 = ssub.s32 9, %s195
        %p197 = scmp.lt.s32.totalorder %s196, 2
        %s198 = scalar_select %p197, %s196, 2
        %s199 = smul.u32 128, %s198
        %s200 = smul.u32 %s199, 2
      $region28: #{_ds_conv_forward.1} parent=23 // pred_fallthru
        _
      // Predicated region
      $region29: #{_ds_conv_forward.1} parent=23 // pred_check
        %p201 = pneg %p76
      $region30: #{_ds_conv_forward.1} parent=23 // pred_check_branch
        %203 = sbr.rel (%p201) target = $region32
      $region31: #{_ds_conv_forward.1} parent=23 // pred_region
        %s204 = smul.u32 %s18, 2
        %s205 = sadd.s32 %s204, 2
        %p206 = scmp.lt.s32.totalorder %s17, 1
        %s207 = scalar_select %p206, %s17, 1
        %p208 = scmp.lt.s32.totalorder %s205, 8
        %s209 = scalar_select %p208, %s205, 8
        %s210 = smul.addr %s209, 2
        %s211 = smul.addr %s207, 18
        %s212 = sadd.s32 %s210, %s211
        %s213 = smul.addr %s212, 8
        %s214 = scalar_lea.vmem %s1, %s213
        %s215 = smul.u32 %s18, 2
        %s216 = sadd.s32 %s215, 2
      $region32: #{_ds_conv_forward.1} parent=23 // pred_fallthru
        _
    $region24: #{_ds_conv_forward.1} parent=5 // pred_fallthru
      _
    %p217 = scmp.le.s32.totalorder 1, %s10
    %p218 = scmp.lt.s32.totalorder %s10, 9
    %p219 = pnand %p217, %p218
    %p220 = pneg %p219
    // Predicated region
    $region33: #{_ds_conv_forward.1} parent=5 // pred_check
      _
    $region34: #{_ds_conv_forward.1} parent=5 // pred_check_branch
      %222 = sbr.rel (%p219) target = $region36
    $region35: #{_ds_conv_forward.1} parent=5 // pred_region
      %s223 = ssub.s32 %s10, 1
      %s224 = smul.u32 2, %s20
      %s225 = ssub.s32 9, %s224
      %p226 = scmp.lt.s32.totalorder %s225, 2
      %s227 = scalar_select %p226, %s225, 2
      %s228 = smul.u32 128, %s227
      %s229 = smul.u32 %s228, 2
      %p230 = scmp.lt.s32.totalorder %s19, 1
      %s231 = scalar_select %p230, %s19, 1
      %p232 = scmp.lt.s32.totalorder %s224, 8
      %s233 = scalar_select %p232, %s224, 8
      %s234 = smul.addr %s233, 2
      %s235 = smul.addr %s231, 18
      %s236 = sadd.s32 %s234, %s235
      %s237 = smul.addr %s236, 8
      %s238 = scalar_lea.vmem %s0, %s237
      %p239 = pneg %p50
      %p240 = pneg %p47
      %s241 = smul.u32 %s20, 2
      %s242 = sadd.s32 %s241, 2
      %p243 = scmp.lt.s32.totalorder %s19, 1
      %s244 = scalar_select %p243, %s19, 1
      %p245 = scmp.lt.s32.totalorder %s242, 8
      %s246 = scalar_select %p245, %s242, 8
      %s247 = smul.addr %s246, 2
      %s248 = smul.addr %s244, 18
      %s249 = sadd.s32 %s247, %s248
      %s250 = smul.addr %s249, 8
      %s251 = scalar_lea.vmem %s1, %s250
      %p252 = pneg %p82
      %p253 = pneg %p79
      %p254 = pneg %p103
      %p255 = pneg %p100
      %p256 = pneg %p124
      %p257 = pneg %p121
      %p258 = pneg %p152
      %p259 = pneg %p149
      %s260 = smul.u32 2, %s20
      %p261 = scmp.lt.s32.totalorder %s19, 1
      %s262 = scalar_select %p261, %s19, 1
      %p263 = scmp.lt.s32.totalorder %s260, 7
      %s264 = scalar_select %p263, %s260, 7
      %s265 = smul.addr %s262, 8
      %s266 = sadd.s32 %s264, %s265
      %s267 = smul.addr %s266, 8
      %s268 = scalar_lea.vmem %s4, %s267
      %s269 = smul.u32 2, %s20
      %s270 = ssub.s32 9, %s269
      %p271 = scmp.lt.s32.totalorder %s270, 2
      %s272 = scalar_select %p271, %s270, 2
      %s273 = smul.u32 128, %s272
      %s274 = smul.u32 %s273, 2
      %p275 = scmp.lt.s32.totalorder %s19, 1
      %s276 = scalar_select %p275, %s19, 1
      %p277 = scmp.lt.s32.totalorder %s269, 8
      %s278 = scalar_select %p277, %s269, 8
      %s279 = smul.addr %s278, 2
      %s280 = smul.addr %s276, 18
      %s281 = sadd.s32 %s279, %s280
      %s282 = smul.addr %s281, 8
      %s283 = scalar_lea.vmem %s0, %s282
      %s284 = smul.u32 2, %s20
      %s285 = ssub.s32 9, %s284
      %p286 = scmp.lt.s32.totalorder %s285, 2
      %s287 = scalar_select %p286, %s285, 2
      %s288 = smul.u32 128, %s287
      %s289 = smul.u32 %s288, 2
      %s290 = smul.u32 %s20, 2
      %s291 = sadd.s32 %s290, 2
      %p292 = scmp.lt.s32.totalorder %s19, 1
      %s293 = scalar_select %p292, %s19, 1
      %p294 = scmp.lt.s32.totalorder %s291, 8
      %s295 = scalar_select %p294, %s291, 8
      %s296 = smul.addr %s295, 2
      %s297 = smul.addr %s293, 18
      %s298 = sadd.s32 %s296, %s297
      %s299 = smul.addr %s298, 8
      %s300 = scalar_lea.vmem %s1, %s299
      %s301 = smul.u32 %s20, 2
      %s302 = sadd.s32 %s301, 2
      %s303 = smul.u32 2, %s20
      %p304 = scmp.lt.s32.totalorder %s19, 1
      %s305 = scalar_select %p304, %s19, 1
      %p306 = scmp.lt.s32.totalorder %s303, 7
      %s307 = scalar_select %p306, %s303, 7
      %s308 = smul.addr %s305, 8
      %s309 = sadd.s32 %s307, %s308
      %s310 = smul.addr %s309, 8
      %s311 = scalar_lea.vmem %s4, %s310
      %s312 = smul.u32 2, %s20
      %v313 = vld [vmem:[%s283] sm:$0xff]
      %v314 = vld [vmem:[%s283 + $0x8] sm:$0x1]
      %v315 = vld [vmem:[%s283 + $0x10] sm:$0xff]
      %v316 = vld [vmem:[%s283 + $0x18] sm:$0x1]
      %v317 = vld [vmem:[%s300] sm:$0xff]
      %v318 = vld [vmem:[%s300 + $0x8] sm:$0x1]
      %vm323 = vcmask 1046528
      %v324 = vrot.slane %v313, 1
      %v325 = vrot.slane %v314, 1
      %v326 = vsel %vm323, %v324, %v325
      %v327 = vrot.slane %v315, 1
      %v328 = vrot.slane %v316, 1
      %v329 = vsel %vm323, %v327, %v328
      %330 = vrot.lane.b32.xlu0 %v326, 8
      %v331 = vpop.permute.xlu0 %330
      %332 = vrot.lane.b32.xlu0 %v329, 8
      %v333 = vpop.permute.xlu0 %332
      %336 = vrot.lane.b32.xlu0 %v313, 4
      %v337 = vpop.permute.xlu0 %336
      %338 = vrot.lane.b32.xlu0 %v315, 4
      %v339 = vpop.permute.xlu0 %338
      %342 = vrot.lane.b32.xlu0 %v326, 12
      %v343 = vpop.permute.xlu0 %342
      %344 = vrot.lane.b32.xlu0 %v329, 12
      %v345 = vpop.permute.xlu0 %344
      %349 = vrot.lane.b32.xlu0 %v315, 24
      %v350 = vpop.permute.xlu0 %349
      %351 = vrot.lane.b32.xlu0 %v317, 24
      %v352 = vpop.permute.xlu0 %351
      %v356 = vrot.slane %v317, 1
      %v357 = vrot.slane %v318, 1
      %v358 = vsel %vm323, %v356, %v357
      %359 = vrot.lane.b32.xlu0 %v329, 32
      %v360 = vpop.permute.xlu0 %359
      %361 = vrot.lane.b32.xlu0 %v358, 32
      %v362 = vpop.permute.xlu0 %361
      %vm365 = vcmask 64512
      %v366 = vsel %vm365, %v313, %v331
      %v367 = vsel %vm365, %v315, %v333
      %vm368 = vcmask 97280
      %v369 = vsel %vm368, %v366, %v337
      %v370 = vsel %vm368, %v367, %v339
      %vm371 = vcmask 130048
      %v372 = vsel %vm371, %v369, %v337
      %v373 = vsel %vm371, %v370, %v339
      %vm374 = vcmask 162816
      %v375 = vsel %vm374, %v372, %v343
      %v376 = vsel %vm374, %v373, %v345
      %vm377 = vcmask 195584
      %v378 = vsel %vm377, %v375, %v350
      %v379 = vsel %vm377, %v376, %v352
      %vm380 = vcmask 228352
      %v381 = vsel %vm380, %v378, %v350
      %v382 = vsel %vm380, %v379, %v352
      %vm383 = vcmask 261120
      %v384 = vsel %vm383, %v381, %v360
      %v385 = vsel %vm383, %v382, %v362
      %v386 = vld [vmem:[%s2] sm:$0xff]
      %v387 = vld [vmem:[%s2 + $0x8] sm:$0xff]
      %v388 = vld [vmem:[%s2 + $0x10] sm:$0xff]
      %v389 = vld [vmem:[%s2 + $0x18] sm:$0xff]
      %v390 = vld [vmem:[%s2 + $0x20] sm:$0xf]
      %v391 = vld [vmem:[%s3] sm:$0x1]
      %v393 = vlaneseq
      %v394 = vshrl.u32 %v393, 7
      %v395 = vsub.s32 0, %v394
      %v396 = vrot.slane %v391, %v395
      %vm398 = vcmask 293888
      %v400 = vsel %vm398, %v384, 0
      %v403 = vsel %vm398, %v385, 0
      %vm405 = vcmask 1043456
      %v407 = vsel %vm405, %v390, 0
      %409 = vmatprep.subr.mxu0 0.0
      %410 = vmatpush1.msra.mxu0 0.0
      %411 = vmatprep.subr.mxu0 0.0
      %412 = vmatpush1.msra.mxu0 0.0
      %413 = vmatprep.subr.mxu0 0.0
      %414 = vmatpush1.msra.mxu0 0.0
      %415 = vmatprep.subr.mxu0 0.0
      %416 = vmatpush1.msra.mxu0 0.0
      %417 = vmatprep.subr.mxu0 0.0
      %418 = vmatpush1.msra.mxu0 0.0
      %419 = vmatprep.subr.mxu0 0.0
      %420 = vmatpush1.msra.mxu0 0.0
      %421 = vmatprep.subr.mxu0 0.0
      %422 = vmatpush1.msra.mxu0 0.0
      %423 = vmatprep.subr.mxu0 0.0
      %424 = vmatpush1.msra.mxu0 0.0
      %425 = vmatprep.subr.mxu0 0.0
      %426 = vmatpush1.msra.mxu0 0.0
      %427 = vmatprep.subr.mxu0 0.0
      %428 = vmatpush1.msra.mxu0 0.0
      %429 = vmatprep.subr.mxu0 0.0
      %430 = vmatpush1.msra.mxu0 0.0
      %431 = vmatprep.subr.mxu0 0.0
      %432 = vmatpush1.msra.mxu0 %v407
      %433 = vmatprep.subr.mxu0 0.0
      %434 = vmatpush1.msra.mxu0 %v389
      %435 = vmatprep.subr.mxu0 0.0
      %436 = vmatpush1.msra.mxu0 %v388
      %437 = vmatprep.subr.mxu0 0.0
      %438 = vmatpush1.msra.mxu0 %v387
      %439 = vmatprep.subr.mxu0 0.0
      %440 = vmatpush1.msra.mxu0 %v386
      %441 = vmatprep.subr.mxu0 0.0
      %442 = vmatpush2.msra.mxu0 0.0
      %443 = vmatprep.subr.mxu0 0.0
      %444 = vmatpush2.msra.mxu0 0.0
      %445 = vmatprep.subr.mxu0 0.0
      %446 = vmatpush2.msra.mxu0 0.0
      %447 = vmatprep.subr.mxu0 0.0
      %448 = vmatpush2.msra.mxu0 0.0
      %449 = vmatprep.subr.mxu0 0.0
      %450 = vmatpush2.msra.mxu0 0.0
      %451 = vmatprep.subr.mxu0 0.0
      %452 = vmatpush2.msra.mxu0 0.0
      %453 = vmatprep.subr.mxu0 0.0
      %454 = vmatpush2.msra.mxu0 0.0
      %455 = vmatprep.subr.mxu0 0.0
      %456 = vmatpush2.msra.mxu0 0.0
      %457 = vmatprep.subr.mxu0 0.0
      %458 = vmatpush2.msra.mxu0 0.0
      %459 = vmatprep.subr.mxu0 0.0
      %460 = vmatpush2.msra.mxu0 0.0
      %461 = vmatprep.subr.mxu0 0.0
      %462 = vmatpush2.msra.mxu0 0.0
      %463 = vmatprep.subr.mxu0 0.0
      %464 = vmatpush2.msra.mxu0 0.0
      %465 = vmatprep.subr.mxu0 0.0
      %466 = vmatpush2.msra.mxu0 0.0
      %467 = vmatprep.subr.mxu0 0.0
      %468 = vmatpush2.msra.mxu0 0.0
      %469 = vmatprep.subr.mxu0 0.0
      %470 = vmatpush2.msra.mxu0 0.0
      %471 = vmatprep.subr.mxu0 0.0
      %472 = vmatpush2.msra.mxu0 0.0
      %473 = vmatprep.mubr.f32.mxu0 0.0
      %474 = vmatmul.mubr.f32.gmra.mxu0 %v400
      %v475 = vpop.f32.mrf.mxu0
      %v476 = vadd.f32 %v396, %v475
      %v477 = vpop.f32.mrf.mxu0
      %478 = vmatprep.mubr.f32.mxu0 0.0
      %479 = vmatmul.mubr.f32.gmra.mxu0 %v403
      %v480 = vpop.f32.mrf.mxu0
      %v481 = vadd.f32 %v396, %v480
      %v482 = vpop.f32.mrf.mxu0
      %483 = vdwg.mxu0
      %484 = vst.msk [vmem:[%s311] sm:$0xff] %vm365, %v476
      %485 = vst.msk [vmem:[%s311 + $0x8] sm:$0xff] %vm365, %v481
      %s486 = smul.u32 2, %s20
      %p487 = scmp.lt.s32.totalorder %s19, 1
      %s488 = scalar_select %p487, %s19, 1
      %p489 = scmp.lt.s32.totalorder %s486, 7
      %s490 = scalar_select %p489, %s486, 7
      %s491 = smul.addr %s488, 8
      %s492 = sadd.s32 %s490, %s491
      %s493 = smul.addr %s492, 8
      %s494 = scalar_lea.vmem %s4, %s493
      // Predicated region
      $region37: #{_ds_conv_forward.1} parent=35 // pred_check
        %p495 = pneg %p149
      $region38: #{_ds_conv_forward.1} parent=35 // pred_check_branch
        %497 = sbr.rel (%p495) target = $region40
      $region39: #{_ds_conv_forward.1} parent=35 // pred_region
        %s498 = smul.u32 2, %s20
      $region40: #{_ds_conv_forward.1} parent=35 // pred_fallthru
        _
    $region36: #{_ds_conv_forward.1} parent=5 // pred_fallthru
      _
    %p499 = scmp.le.s32.totalorder 2, %s10
    // Predicated region
    $region41: #{_ds_conv_forward.1} parent=5 // pred_check
      %p500 = pneg %p499
    $region42: #{_ds_conv_forward.1} parent=5 // pred_check_branch
      %502 = sbr.rel (%p500) target = $region44
    $region43: #{_ds_conv_forward.1} parent=5 // pred_region
      %s503 = ssub.s32 %s10, 2
      // Predicated region
      $region45: #{_ds_conv_forward.1} parent=43 // pred_check
        %p504 = pneg %p155
      $region46: #{_ds_conv_forward.1} parent=43 // pred_check_branch
        %506 = sbr.rel (%p504) target = $region48
      $region47: #{_ds_conv_forward.1} parent=43 // pred_region
        %s507 = smul.u32 2, %s22
        %p508 = scmp.lt.s32.totalorder %s21, 1
        %s509 = scalar_select %p508, %s21, 1
        %p510 = scmp.lt.s32.totalorder %s507, 7
        %s511 = scalar_select %p510, %s507, 7
        %s512 = smul.addr %s509, 8
        %s513 = sadd.s32 %s511, %s512
        %s514 = smul.addr %s513, 8
        %s515 = scalar_lea.vmem %s4, %s514
      $region48: #{_ds_conv_forward.1} parent=43 // pred_fallthru
        _
    $region44: #{_ds_conv_forward.1} parent=5 // pred_fallthru
      _
  $region6: #{_ds_conv_forward.1} parent=0 // loop_footer
    %s14 = sadd.s32 1, %s10
  $region7: #{_ds_conv_forward.1} parent=0 // loop_footer_branch
    %9 = sbr.rel target = $region3
  $region8: #{_ds_conv_forward.1} parent=0 // loop_exit
    _

</llo_original>
